<compile_context>
chip_gen: v6e
topology: v6e:2x2x1
jax: 0.10.0
libtpu: 0.0.40
codegen_flags: <defaults>
</compile_context>

<pallas_src>
import functools

import numpy as np
import jax
import jax.numpy as jnp
from jax.experimental import pallas as pl
from jax.experimental.pallas import tpu as pltpu


def _round_up(v, m):
    return ((v + m - 1) // m) * m


def _vmem_capacity_bytes():
    try:
        info = pltpu.get_tpu_info()
        cap = int(getattr(info, "vmem_capacity_bytes", 0) or 0)
        if cap > 0:
            return cap
    except Exception:
        pass
    return 64 << 20  # conservative fallback (v7x per-TensorCore VMEM)


def _pool_linear_kernel(x_ref, pt_ref, wb_ref, o_ref):
    # x_ref : (tile_nc, H*W)      VMEM, pipelined / double-buffered
    # pt_ref: (h_out_pad, H*W)    VMEM, constant block index -> fetched once
    # wb_ref: (2,)                SMEM, [linear_weight, linear_bias]
    # o_ref : (h_out_pad, tile_nc) VMEM, lane-dense over NC
    #
    # One MXU contraction over the H*W axis performs the overlapping-window
    # average pooling for every output row (QK^T-style contraction on the last
    # dim of both operands); Linear(1,1) is a scalar VPU epilogue on the small
    # f32 result tile, fully hidden under the x DMA.
    acc = jax.lax.dot_general(
        pt_ref[...], x_ref[...],
        dimension_numbers=(((1,), (1,)), ((), ())),
        preferred_element_type=jnp.float32,
    )
    o_ref[...] = acc * wb_ref[0] + wb_ref[1]


@functools.partial(jax.jit, static_argnames=("kernel_size", "stride"))
def classifier_forward(x, weight, bias, *, kernel_size, stride):
    """x: (N, C, H, W) float32/bfloat16. weight: (1,1), bias: (1,) — nn.Linear(1,1)."""
    n, c, h, w = x.shape
    kh, kw = kernel_size
    h_out = (h - kh) // stride + 1
    w_out = (w - kw) // stride + 1
    assert w_out == 1, "Linear(1,1) requires pooled width == 1 (as in the PyTorch module)"

    if x.dtype != jnp.float32 and x.dtype != jnp.bfloat16:
        x = x.astype(jnp.float32)

    nc = n * c
    hw = h * w
    h_out_pad = _round_up(max(h_out, 1), 8)          # sublane-aligned output rows
    bytes_x = jnp.dtype(x.dtype).itemsize

    # Trace-time constant P^T: row ho selects the (kh, kw) pooling window that
    # starts at image row ho*stride, col 0, with the 1/(kh*kw) AvgPool
    # normalization baked in.  The Linear weight is NOT folded in (kernel epilogue),
    # so this stays a pure compile-time constant.
    base = np.zeros((h_out_pad, hw), dtype=np.float32)
    inv = 1.0 / float(kh * kw)
    for ho in range(h_out):
        for r in range(ho * stride, ho * stride + kh):
            base[ho, r * w: r * w + kw] = inv
    pt = jnp.asarray(base, dtype=x.dtype)

    # --- Tile the NC axis -----------------------------------------------------
    vmem_cap = _vmem_capacity_bytes()
    p_bytes = 2 * h_out_pad * hw * bytes_x                 # P^T (small after transpose)
    row_bytes = 2 * hw * bytes_x + 2 * h_out_pad * 4       # dbl-buffered x + out per NC row
    tile_budget = max(vmem_cap // 2 - p_bytes, 128 * row_bytes)
    tile_nc_max = max(128, (tile_budget // row_bytes // 128) * 128)

    if nc <= 128:
        tile_nc = nc                                       # single full block
    else:
        # Lane-aligned tiles; guarantee >= 2 grid steps so dual-TC chips shard
        # the NC axis and the pipeline has something to double-buffer against.
        tile_nc = min(tile_nc_max, _round_up((nc + 1) // 2, 128))
        if tile_nc >= nc:
            tile_nc = nc
    grid = (nc + tile_nc - 1) // tile_nc                   # ragged last block OK

    xr = x.reshape(nc, hw)                                 # no pad, no dtype copy

    vmem_needed = (2 * tile_nc * hw * bytes_x              # dbl-buffered x blocks
                   + p_bytes                               # P^T
                   + 2 * h_out_pad * tile_nc * 4           # dbl-buffered out blocks
                   + (2 << 20))                            # slack
    vmem_limit = int(min(max(vmem_needed, 16 << 20), vmem_cap * 3 // 4))

    wb = jnp.stack([weight[0, 0], bias[0]]).astype(jnp.float32)

    out = pl.pallas_call(
        _pool_linear_kernel,
        out_shape=jax.ShapeDtypeStruct((h_out_pad, nc), jnp.float32),
        grid_spec=pltpu.PrefetchScalarGridSpec(
            num_scalar_prefetch=0,
            grid=(grid,),
            in_specs=[
                pl.BlockSpec((tile_nc, hw), lambda i: (i, 0)),       # x rows (pipelined)
                pl.BlockSpec((h_out_pad, hw), lambda i: (0, 0)),     # P^T (constant index)
                pl.BlockSpec(memory_space=pltpu.MemorySpace.SMEM),   # [weight, bias]
            ],
            out_specs=pl.BlockSpec((h_out_pad, tile_nc), lambda i: (0, i)),
        ),
        compiler_params=pltpu.CompilerParams(
            dimension_semantics=("parallel",),
            vmem_limit_bytes=vmem_limit,
        ),
    )(xr, pt, wb)

    # (h_out_pad, nc) -> (N, C, H_out, 1).  Slice/transpose act only on the tiny
    # output tile, not on x.
    return out[:h_out, :].T.reshape(n, c, h_out, w_out)


def _reference(x, weight, bias, kernel_size, stride):
    """Plain-JAX reference of AvgPool2d + Linear(1,1) for a correctness check."""
    n, c, h, w = x.shape
    kh, kw = kernel_size
    h_out = (h - kh) // stride + 1
    w_out = (w - kw) // stride + 1
    rows = []
    for ho in range(h_out):
        cols = []
        for wo in range(w_out):
            win = x[:, :, ho * stride: ho * stride + kh, wo * stride: wo * stride + kw]
            cols.append(jnp.mean(win, axis=(2, 3))[..., None])
        rows.append(jnp.concatenate(cols, axis=-1)[..., None, :])
    pooled = jnp.concatenate(rows, axis=-2)                   # (N, C, H_out, W_out)
    return pooled * weight[0, 0] + bias[0]


if __name__ == "__main__":
    # Module construction (synthetic, deterministic):
    #   in_features = (8, 16) -> AvgPool2d(kernel_size=(8,16), stride=len(in_features)=2)
    #   Linear(1, 1) params drawn deterministically from PRNGKey(0).
    in_features = (8, 16)
    stride = len(in_features)

    key = jax.random.PRNGKey(0)
    kx, kw_, kb = jax.random.split(key, 3)

    N, C, H, W = 2, 4, 16, 16
    x = jax.random.normal(kx, (N, C, H, W), dtype=jnp.float32)
    # nn.Linear(1,1) init is U(-1, 1) for both weight and bias (fan_in = 1).
    weight = jax.random.uniform(kw_, (1, 1), minval=-1.0, maxval=1.0, dtype=jnp.float32)
    bias = jax.random.uniform(kb, (1,), minval=-1.0, maxval=1.0, dtype=jnp.float32)

    out = classifier_forward(x, weight, bias, kernel_size=in_features, stride=stride)
    out = jax.block_until_ready(out)

    ref = _reference(x, weight, bias, in_features, stride)
    h_out = (H - in_features[0]) // stride + 1
    assert out.shape == (N, C, h_out, 1), out.shape
    assert jnp.allclose(out, ref, atol=1e-4, rtol=1e-4), "mismatch vs reference"

    print("KERNEL_OK")
</pallas_src>

<mosaic_0001>
module attributes {stable_mosaic.version = 11 : i64} {
  func.func @_pool_linear_kernel(%arg0: i32, %arg1: memref<8x256xf32, #tpu.memory_space<vmem>>, %arg2: memref<8x256xf32, #tpu.memory_space<vmem>>, %arg3: memref<2xf32, #tpu.memory_space<smem>>, %arg4: memref<8x8xf32, #tpu.memory_space<vmem>>) attributes {dimension_semantics = [#tpu.dimension_semantics<parallel>], iteration_bounds = array<i64: 1>, scalar_prefetch = 0 : i64, scratch_operands = 0 : i64, tpu.core_type = #tpu.core_type<tc>, window_params = [{transform_indices = @transform_0, window_bounds = array<i64: 8, 256>}, {pipeline_mode = #tpu.pipeline_mode<synchronous>, transform_indices = @transform_1, window_bounds = array<i64: 8, 256>}, {transform_indices = @transform_2, window_bounds = array<i64: 2>}, {transform_indices = @transform_3, window_bounds = array<i64: 8, 8>}]} {
    %c0 = arith.constant 0 : index
    %c0_0 = arith.constant 0 : index
    %0 = vector.load %arg2[%c0, %c0_0] : memref<8x256xf32, #tpu.memory_space<vmem>>, vector<8x256xf32>
    %c0_1 = arith.constant 0 : index
    %c0_2 = arith.constant 0 : index
    %1 = vector.load %arg1[%c0_1, %c0_2] : memref<8x256xf32, #tpu.memory_space<vmem>>, vector<8x256xf32>
    %cst = arith.constant dense<0.000000e+00> : vector<8x8xf32>
    %2 = tpu.matmul %0, %1, %cst {dimension_numbers = #tpu.dot_dimension_numbers<[1], [1], [0], [0], [0, 0, 1, 0], [], []>} : vector<8x256xf32>, vector<8x256xf32>, vector<8x8xf32> -> vector<8x8xf32>
    %c0_3 = arith.constant 0 : index
    %3 = memref.load %arg3[%c0_3] : memref<2xf32, #tpu.memory_space<smem>>
    %4 = vector.broadcast %3 : f32 to vector<8x8xf32>
    %5 = arith.mulf %2, %4 : vector<8x8xf32>
    %c1 = arith.constant 1 : index
    %6 = memref.load %arg3[%c1] : memref<2xf32, #tpu.memory_space<smem>>
    %7 = vector.broadcast %6 : f32 to vector<8x8xf32>
    %8 = arith.addf %5, %7 : vector<8x8xf32>
    %c0_4 = arith.constant 0 : index
    %c0_5 = arith.constant 0 : index
    %9 = vector.load %arg4[%c0_4, %c0_5] : memref<8x8xf32, #tpu.memory_space<vmem>>, vector<8x8xf32>
    tpu.vector_store %arg4[%c0_4, %c0_5], %8 {strides = array<i32>} : memref<8x8xf32, #tpu.memory_space<vmem>>, vector<8x8xf32>,
    return
  }
  func.func @transform_0(%arg0: i32) -> (i32, i32) {
    %c0_i32 = arith.constant 0 : i32
    %c0_i32_0 = arith.constant 0 : i32
    return %arg0, %c0_i32 : i32, i32
  }
  func.func @transform_1(%arg0: i32) -> (i32, i32) {
    %c0_i32 = arith.constant 0 : i32
    %c0_i32_0 = arith.constant 0 : i32
    %c0_i32_1 = arith.constant 0 : i32
    return %c0_i32, %c0_i32_0 : i32, i32
  }
  func.func @transform_2(%arg0: i32) -> i32 {
    %c0_i32 = arith.constant 0 : i32
    %c0_i32_0 = arith.constant 0 : i32
    return %c0_i32 : i32
  }
  func.func @transform_3(%arg0: i32) -> (i32, i32) {
    %c0_i32 = arith.constant 0 : i32
    %c0_i32_0 = arith.constant 0 : i32
    return %c0_i32, %arg0 : i32, i32
  }
}

</mosaic_0001>

<llo_original>
// kernel: classifier_forward.1
$region0: #{classifier_forward.1}
  #allocation0 [shape = 'u32[]', space=smem, size = 0x4, offset = 0x4, fixed_abs, tag = 'smem constant byte address 0x4 - core index']
  #allocation1 [shape = 'u32[144,128]{1,0:T(1,128)}', space=vmem, size = 0x12000, scoped, tag = 'internal scratch']
  %s0 = inlined_call_operand.vmem [shape: f32[8,256], index: 0, kind: input, shape index: {}]
  %s1 = inlined_call_operand.vmem [shape: f32[8,256], index: 1, kind: input, shape index: {}]
  %s2 = inlined_call_operand.vmem [shape: f32[2], index: 2, kind: input, shape index: {}]
  %s3 = inlined_call_operand.vmem [shape: f32[8,8], index: 3, kind: output, shape index: {}]
  %s4 = sld [smem:[#allocation0]]
  $region26: #{classifier_forward.1} parent=0
    _
  %s6 = ssub.s32 1, %s4
  %s7 = scalar_select 0, %s6, %s4
  $region1: #{classifier_forward.1} parent=0
    #allocation2 [shape = 'u8[512]{0}', space=smem, size = 0x200, scoped, tag = 'input window, operand 2, single buffered']
    #allocation3 [shape = 's32[1]{0}', space=sflag, size = 0x4, scoped, tag = 'scoped memory for classifier_forward.1']
    %8 = vsyncpa [#allocation3], 0
    // Predicated region
    $region2: #{classifier_forward.1} parent=1 // pred_check
      _
    $region3: #{classifier_forward.1} parent=1 // pred_check_branch
      %10 = sbr.rel (0) target = $region5
    $region4: #{classifier_forward.1} parent=1 // pred_region
      _
    $region5: #{classifier_forward.1} parent=1 // pred_fallthru
      _
    // Predicated region
    $region6: #{classifier_forward.1} parent=1 // pred_check
      _
    $region7: #{classifier_forward.1} parent=1 // pred_check_branch
      %12 = sbr.rel (0) target = $region9
    $region8: #{classifier_forward.1} parent=1 // pred_region
      _
    $region9: #{classifier_forward.1} parent=1 // pred_fallthru
      _
    // Predicated region
    $region10: #{classifier_forward.1} parent=1 // pred_check
      _
    $region11: #{classifier_forward.1} parent=1 // pred_check_branch
      %14 = sbr.rel (0) target = $region13
    $region12: #{classifier_forward.1} parent=1 // pred_region
      %s16 = ssub.s32 16, 16
      %17 = vsyncadd [#allocation3], %s16
      %s19 = sshll.u32 %s2, 4
      %s20 = int_to_ptr.vmem [resolvable:$true] %s19
      %22 = dma.vmem_to_smem %s20, 16, [#allocation2], [#allocation3]
    $region13: #{classifier_forward.1} parent=1 // pred_fallthru
      _
    // Predicated region
    $region14: #{classifier_forward.1} parent=1 // pred_check
      _
    $region15: #{classifier_forward.1} parent=1 // pred_check_branch
      %24 = sbr.rel (0) target = $region17
    $region16: #{classifier_forward.1} parent=1 // pred_region
      %25 = dma.done [#allocation3], 16
    $region17: #{classifier_forward.1} parent=1 // pred_fallthru
      _
    %26 = sfence
    %v27 = vld [vmem:[%s1] sm:$0xff]
    %v28 = vld [vmem:[%s1 + $0x8] sm:$0xff]
    %v29 = vld [vmem:[%s0] sm:$0xff]
    %v30 = vld [vmem:[%s0 + $0x8] sm:$0xff]
    %31 = vmatprep.subr.mxu0 0.0
    %32 = vmatpush1.xpose.msra.mxu0 0.0
    %33 = vmatprep.subr.mxu0 0.0
    %34 = vmatpush1.xpose.msra.mxu0 0.0
    %35 = vmatprep.subr.mxu0 0.0
    %36 = vmatpush1.xpose.msra.mxu0 0.0
    %37 = vmatprep.subr.mxu0 0.0
    %38 = vmatpush1.xpose.msra.mxu0 0.0
    %39 = vmatprep.subr.mxu0 0.0
    %40 = vmatpush1.xpose.msra.mxu0 0.0
    %41 = vmatprep.subr.mxu0 0.0
    %42 = vmatpush1.xpose.msra.mxu0 0.0
    %43 = vmatprep.subr.mxu0 0.0
    %44 = vmatpush1.xpose.msra.mxu0 0.0
    %45 = vmatprep.subr.mxu0 0.0
    %46 = vmatpush1.xpose.msra.mxu0 0.0
    %47 = vmatprep.subr.mxu0 0.0
    %48 = vmatpush1.xpose.msra.mxu0 0.0
    %49 = vmatprep.subr.mxu0 0.0
    %50 = vmatpush1.xpose.msra.mxu0 0.0
    %51 = vmatprep.subr.mxu0 0.0
    %52 = vmatpush1.xpose.msra.mxu0 0.0
    %53 = vmatprep.subr.mxu0 0.0
    %54 = vmatpush1.xpose.msra.mxu0 0.0
    %55 = vmatprep.subr.mxu0 0.0
    %56 = vmatpush1.xpose.msra.mxu0 0.0
    %57 = vmatprep.subr.mxu0 0.0
    %58 = vmatpush1.xpose.msra.mxu0 0.0
    %59 = vmatprep.subr.mxu0 0.0
    %60 = vmatpush1.xpose.msra.mxu0 0.0
    %61 = vmatprep.subr.mxu0 %v30
    %62 = vmatpush1.xpose.msra.mxu0 %v29
    %63 = vmatprep.subr.mxu0 0.0
    %64 = vmatpush2.xpose.msra.mxu0 0.0
    %65 = vmatprep.subr.mxu0 0.0
    %66 = vmatpush2.xpose.msra.mxu0 0.0
    %67 = vmatprep.subr.mxu0 0.0
    %68 = vmatpush2.xpose.msra.mxu0 0.0
    %69 = vmatprep.subr.mxu0 0.0
    %70 = vmatpush2.xpose.msra.mxu0 0.0
    %71 = vmatprep.subr.mxu0 0.0
    %72 = vmatpush2.xpose.msra.mxu0 0.0
    %73 = vmatprep.subr.mxu0 0.0
    %74 = vmatpush2.xpose.msra.mxu0 0.0
    %75 = vmatprep.subr.mxu0 0.0
    %76 = vmatpush2.xpose.msra.mxu0 0.0
    %77 = vmatprep.subr.mxu0 0.0
    %78 = vmatpush2.xpose.msra.mxu0 0.0
    %79 = vmatprep.subr.mxu0 0.0
    %80 = vmatpush2.xpose.msra.mxu0 0.0
    %81 = vmatprep.subr.mxu0 0.0
    %82 = vmatpush2.xpose.msra.mxu0 0.0
    %83 = vmatprep.subr.mxu0 0.0
    %84 = vmatpush2.xpose.msra.mxu0 0.0
    %85 = vmatprep.subr.mxu0 0.0
    %86 = vmatpush2.xpose.msra.mxu0 0.0
    %87 = vmatprep.subr.mxu0 0.0
    %88 = vmatpush2.xpose.msra.mxu0 0.0
    %89 = vmatprep.subr.mxu0 0.0
    %90 = vmatpush2.xpose.msra.mxu0 0.0
    %91 = vmatprep.subr.mxu0 0.0
    %92 = vmatpush2.xpose.msra.mxu0 0.0
    %93 = vmatprep.subr.mxu0 0.0
    %94 = vmatpush2.xpose.msra.mxu0 0.0
    %95 = vmatprep.mubr.f32.mxu0 %v28
    %96 = vmatmul.mubr.f32.gmra.mxu0 %v27
    %v97 = vpop.f32.mrf.mxu0
    %v98 = vadd.f32 0.0, %v97
    %v99 = vpop.f32.mrf.mxu0
    %100 = vdwg.mxu0
    %s101 = sld [smem:[#allocation2]]
    %v102 = vstv %s101
    %v103 = vmul.f32 %v98, %v102
    %s104 = sld [smem:[#allocation2 + $0x1]]
    %v105 = vstv %s104
    %v106 = vadd.f32 %v103, %v105
    %vm107 = vcmask 64512
    %108 = vst.msk [vmem:[%s3] sm:$0xff] %vm107, %v106
    // Predicated region
    $region18: #{classifier_forward.1} parent=1 // pred_check
      _
    $region19: #{classifier_forward.1} parent=1 // pred_check_branch
      %110 = sbr.rel (0) target = $region21
    $region20: #{classifier_forward.1} parent=1 // pred_region
      _
    $region21: #{classifier_forward.1} parent=1 // pred_fallthru
      _
    // Predicated region
    $region22: #{classifier_forward.1} parent=1 // pred_check
      _
    $region23: #{classifier_forward.1} parent=1 // pred_check_branch
      %112 = sbr.rel (0) target = $region25
    $region24: #{classifier_forward.1} parent=1 // pred_region
      _
    $region25: #{classifier_forward.1} parent=1 // pred_fallthru
      _
    %113 = vsyncpa [#allocation3], 1

</llo_original>
